<compile_context>
chip_gen: v7x
topology: tpu7x:2x2x1
jax: 0.10.0
libtpu: 0.0.40
codegen_flags: <defaults>
</compile_context>

<pallas_src>
import functools

import jax
import jax.numpy as jnp
from jax import lax
from jax.experimental import pallas as pl
from jax.experimental.pallas import tpu as pltpu


def _round_up(x, m):
    return ((x + m - 1) // m) * m


def prepare_projection_weight(w_linear, compute_dtype=None):
    """Prepare nn.Linear(2D, D, bias=False).weight (shape [D, 2D]) for the kernel.

    Call ONCE outside the decode loop (hoists transpose / cast / lane padding).
    Returns W.T zero-padded on the output dim to a multiple of 128: [2D, D_pad].
    """
    d, two_d = w_linear.shape
    assert two_d == 2 * d, "expected nn.Linear(2*D, D) weight of shape [D, 2D]"
    d_pad = _round_up(d, 128)
    wt = jnp.transpose(w_linear)                       # [2D, D]
    if compute_dtype is not None:
        wt = wt.astype(compute_dtype)
    if d_pad != d:
        wt = jnp.pad(wt, ((0, 0), (0, d_pad - d)))     # zero lanes -> exact slice later
    return wt                                          # [2D, D_pad]


def _gather_project_kernel(idx_ref, emb_ref, w_ref, out_ref, fbuf, cbuf, sem,
                           *, tb, batch, dim):
    """One batch tile (TB rows) per grid step.

    idx_ref: SMEM scalar-prefetch ref, flat [2*B] int32 (first_b, current_b per b).
    emb_ref: full [B, N, D] embeddings ref left in HBM (memory_space=pl.ANY).
    w_ref:   resident fused projection weight [2D, D_pad] in VMEM.
    out_ref: [TB, D_pad] output tile.
    fbuf/cbuf: [TB, D] VMEM gather scratch (first / current node rows).
    sem:     shared DMA semaphore for the row-gather copies.
    """
    t = pl.program_id(0)
    base = t * tb
    rows = jnp.minimum(tb, batch - base)     # valid rows in this (possibly last) tile

    # Phase 1: issue all 2*rows row-gather DMAs so they overlap each other.
    def _start(r, carry):
        b = base + r
        f = idx_ref[2 * b]
        c = idx_ref[2 * b + 1]
        pltpu.make_async_copy(emb_ref.at[b, f], fbuf.at[r], sem).start()
        pltpu.make_async_copy(emb_ref.at[b, c], cbuf.at[r], sem).start()
        return carry

    lax.fori_loop(0, rows, _start, 0)

    # Phase 2: wait for all of them (same-sized descriptors on the same sem).
    def _wait(r, carry):
        pltpu.make_async_copy(emb_ref.at[0, 0], fbuf.at[0], sem).wait()
        pltpu.make_async_copy(emb_ref.at[0, 0], cbuf.at[0], sem).wait()
        return carry

    lax.fori_loop(0, rows, _wait, 0)

    # out = first @ W.T[:D] + cur @ W.T[D:]  (no lane concat; f32 accumulation).
    out = jnp.dot(fbuf[...], w_ref[:dim, :], preferred_element_type=jnp.float32)
    out = out + jnp.dot(cbuf[...], w_ref[dim:, :], preferred_element_type=jnp.float32)
    out_ref[...] = out.astype(out_ref.dtype)


def _placeholder_kernel(wp_ref, w_ref, out_ref):
    """step < 1 path: out tile = broadcast(W_placeholder @ W.T). No embeddings DMA."""
    row = jnp.dot(wp_ref[...], w_ref[...], preferred_element_type=jnp.float32)  # (1, D_pad)
    out_ref[...] = jnp.broadcast_to(row, out_ref.shape).astype(out_ref.dtype)


def tsp_context_embedder(embeddings, first_node, current_node, step_i,
                         w_placeholder, w_proj):
    """Forward pass of TSPContextEmbedder.

    embeddings:    [B, N, D] (kept in its source dtype; NOT upcast here)
    first_node:    [B] int, current_node: [B] int
    step_i:        HOST Python int (td['i'].item() equivalent; avoids a blocking
                   device readback inside the decode loop)
    w_placeholder: [2D]
    w_proj:        [2D, D_pad] prepared ONCE via prepare_projection_weight()
    Returns [B, D] in embeddings.dtype.
    """
    b, n, d = embeddings.shape
    two_d, d_pad = w_proj.shape
    assert two_d == 2 * d

    out_dtype = embeddings.dtype
    tb = b if b <= 256 else 256               # batch tile (MXU-sized on v6e/v7x)
    num_tiles = pl.cdiv(b, tb)

    if step_i < 1:
        wp_row = w_placeholder.astype(w_proj.dtype).reshape(1, two_d)
        out_padded = pl.pallas_call(
            _placeholder_kernel,
            out_shape=jax.ShapeDtypeStruct((b, d_pad), out_dtype),
            grid=(num_tiles,),
            in_specs=[pl.BlockSpec((1, two_d), lambda t: (0, 0)),
                      pl.BlockSpec((two_d, d_pad), lambda t: (0, 0))],
            out_specs=pl.BlockSpec((tb, d_pad), lambda t: (t, 0)),
            compiler_params=pltpu.CompilerParams(
                dimension_semantics=("parallel",)),
        )(wp_row, w_proj)
    else:
        # Flat SMEM index vector [first_0, cur_0, first_1, cur_1, ...].
        idx = jnp.stack([first_node.astype(jnp.int32),
                         current_node.astype(jnp.int32)], axis=-1).reshape(-1)

        kernel = functools.partial(_gather_project_kernel, tb=tb, batch=b, dim=d)
        emb_item = jnp.dtype(embeddings.dtype).itemsize
        flops = 2 * b * two_d * d_pad
        bytes_accessed = (2 * b * d * emb_item                          # gathered rows
                          + two_d * d_pad * jnp.dtype(w_proj.dtype).itemsize
                          + b * d_pad * jnp.dtype(out_dtype).itemsize)  # output

        out_padded = pl.pallas_call(
            kernel,
            out_shape=jax.ShapeDtypeStruct((b, d_pad), out_dtype),
            grid_spec=pltpu.PrefetchScalarGridSpec(
                num_scalar_prefetch=1,
                grid=(num_tiles,),
                in_specs=[
                    # Embeddings stay in HBM; rows are gathered by manual DMA.
                    pl.BlockSpec(memory_space=pl.ANY),
                    # Fused projection weight: constant block -> VMEM-resident.
                    pl.BlockSpec((two_d, d_pad), lambda t, idx_ref: (0, 0)),
                ],
                out_specs=pl.BlockSpec((tb, d_pad), lambda t, idx_ref: (t, 0)),
                scratch_shapes=[
                    pltpu.VMEM((tb, d), embeddings.dtype),   # first-node rows
                    pltpu.VMEM((tb, d), embeddings.dtype),   # current-node rows
                    pltpu.SemaphoreType.DMA,                 # shared gather sem
                ],
            ),
            compiler_params=pltpu.CompilerParams(
                dimension_semantics=("parallel",)),
            cost_estimate=pl.CostEstimate(
                flops=int(flops), transcendentals=0,
                bytes_accessed=int(bytes_accessed)),
        )(idx, embeddings, w_proj)

    if d_pad == d:
        return out_padded
    return out_padded[:, :d]


def _reference(embeddings, first_node, current_node, step_i, w_placeholder, w_linear):
    """Pure-JAX reference mirroring the PyTorch forward."""
    b, n, d = embeddings.shape
    if step_i < 1:
        ctx = jnp.broadcast_to(w_placeholder[None, :], (b, 2 * d))
    else:
        first_emb = embeddings[jnp.arange(b), first_node]
        cur_emb = embeddings[jnp.arange(b), current_node]
        ctx = jnp.concatenate([first_emb, cur_emb], axis=-1)
    return ctx @ w_linear.T


if __name__ == "__main__":
    B, N, D = 2, 8, 32            # batch, num_nodes, embedding_dim
    key = jax.random.PRNGKey(0)
    k_emb, k_wp, k_w, k_f, k_c = jax.random.split(key, 5)

    embeddings = jax.random.normal(k_emb, (B, N, D), dtype=jnp.float32)
    # W_placeholder ~ Uniform(-1, 1), shape [2*D]
    w_placeholder = jax.random.uniform(k_wp, (2 * D,), minval=-1.0, maxval=1.0,
                                       dtype=jnp.float32)
    # nn.Linear(2D, D, bias=False).weight ~ U(-1/sqrt(2D), 1/sqrt(2D)), shape [D, 2D]
    bound = 1.0 / float(jnp.sqrt(2.0 * D))
    w_linear = jax.random.uniform(k_w, (D, 2 * D), minval=-bound, maxval=bound,
                                  dtype=jnp.float32)

    first_node = jax.random.randint(k_f, (B,), 0, N, dtype=jnp.int32)
    current_node = jax.random.randint(k_c, (B,), 0, N, dtype=jnp.int32)

    # Weight prep hoisted out of the per-decode-step call (done exactly once).
    w_proj = prepare_projection_weight(w_linear, compute_dtype=jnp.float32)

    ok = True
    for step_i in (0, 3):  # placeholder branch and gather branch (host ints)
        out = tsp_context_embedder(embeddings, first_node, current_node, step_i,
                                   w_placeholder, w_proj)
        out = jax.block_until_ready(out)
        ref = _reference(embeddings, first_node, current_node, step_i,
                         w_placeholder, w_linear)
        ok = ok and bool(jnp.allclose(out, ref, atol=1e-5, rtol=1e-5))

    if ok:
        print("KERNEL_OK")
    else:
        print("KERNEL_MISMATCH")
</pallas_src>

<mosaic_0001>
module attributes {stable_mosaic.version = 11 : i64} {
  func.func @_placeholder_kernel(%arg0: i32, %arg1: memref<1x64xf32, #tpu.memory_space<vmem>>, %arg2: memref<64x128xf32, #tpu.memory_space<vmem>>, %arg3: memref<2x128xf32, #tpu.memory_space<vmem>>) attributes {dimension_semantics = [#tpu.dimension_semantics<parallel>], iteration_bounds = array<i64: 1>, scalar_prefetch = 0 : i64, scratch_operands = 0 : i64, tpu.core_type = #tpu.core_type<tc>, window_params = [{pipeline_mode = #tpu.pipeline_mode<synchronous>, transform_indices = @transform_0, window_bounds = array<i64: 1, 64>}, {pipeline_mode = #tpu.pipeline_mode<synchronous>, transform_indices = @transform_1, window_bounds = array<i64: 64, 128>}, {transform_indices = @transform_2, window_bounds = array<i64: 2, 128>}]} {
    %c0 = arith.constant 0 : index
    %c0_0 = arith.constant 0 : index
    %0 = vector.load %arg1[%c0, %c0_0] : memref<1x64xf32, #tpu.memory_space<vmem>>, vector<1x64xf32>
    %c0_1 = arith.constant 0 : index
    %c0_2 = arith.constant 0 : index
    %1 = vector.load %arg2[%c0_1, %c0_2] : memref<64x128xf32, #tpu.memory_space<vmem>>, vector<64x128xf32>
    %cst = arith.constant dense<0.000000e+00> : vector<1x128xf32>
    %2 = tpu.matmul %0, %1, %cst {dimension_numbers = #tpu.dot_dimension_numbers<[1], [0], [0], [1], [0, 0, 1, 1], [], []>} : vector<1x64xf32>, vector<64x128xf32>, vector<1x128xf32> -> vector<1x128xf32>
    %3 = vector.shape_cast %2 : vector<1x128xf32> to vector<1x128xf32>
    %4 = vector.broadcast %3 : vector<1x128xf32> to vector<2x128xf32>
    %c0_3 = arith.constant 0 : index
    %c0_4 = arith.constant 0 : index
    %5 = vector.load %arg3[%c0_3, %c0_4] : memref<2x128xf32, #tpu.memory_space<vmem>>, vector<2x128xf32>
    tpu.vector_store %arg3[%c0_3, %c0_4], %4 {strides = array<i32>} : memref<2x128xf32, #tpu.memory_space<vmem>>, vector<2x128xf32>,
    return
  }
  func.func @transform_0(%arg0: i32) -> (i32, i32) {
    %c0_i32 = arith.constant 0 : i32
    %c0_i32_0 = arith.constant 0 : i32
    %c0_i32_1 = arith.constant 0 : i32
    return %c0_i32, %c0_i32_0 : i32, i32
  }
  func.func @transform_1(%arg0: i32) -> (i32, i32) {
    %c0_i32 = arith.constant 0 : i32
    %c0_i32_0 = arith.constant 0 : i32
    %c0_i32_1 = arith.constant 0 : i32
    return %c0_i32, %c0_i32_0 : i32, i32
  }
  func.func @transform_2(%arg0: i32) -> (i32, i32) {
    %c0_i32 = arith.constant 0 : i32
    %c0_i32_0 = arith.constant 0 : i32
    return %arg0, %c0_i32 : i32, i32
  }
}

</mosaic_0001>

<llo_original>
// kernel: tpu_custom_call.1
$region0: #{tpu_custom_call.1}
  #allocation0 [shape = 'u32[]', space=smem, size = 0x4, offset = 0x4, fixed_abs, tag = 'smem constant byte address 0x4 - core index']
  #allocation1 [shape = 'u32[144,128]{1,0:T(1,128)}', space=vmem, size = 0x12000, scoped, tag = 'internal scratch']
  %s0 = inlined_call_operand.hbm [shape: f32[1,64], index: 0, kind: input, shape index: {}]
  %s1 = inlined_call_operand.hbm [shape: f32[64,128], index: 1, kind: input, shape index: {}]
  %s2 = inlined_call_operand.hbm [shape: f32[2,128], index: 2, kind: output, shape index: {}]
  %s3 = sld [smem:[#allocation0]]
  $region26: #{tpu_custom_call.1} parent=0
    _
  %s5 = ssub.s32 1, %s3
  %s6 = scalar_select 0, %s5, %s3
  $region1: #{tpu_custom_call.1} parent=0
    #allocation2 [shape = 'u8[512]{0}', space=vmem, size = 0x400, scoped, tag = 'input window, operand 0, single buffered']
    #allocation3 [shape = 's32[1]{0}', space=sflag, size = 0x4, scoped, tag = 'scoped memory for tpu_custom_call.1']
    #allocation4 [shape = 's32[1]{0}', space=sflag, size = 0x4, scoped, tag = 'scoped memory for tpu_custom_call.1']
    #allocation5 [shape = 'u8[32768]{0}', space=vmem, size = 0x8000, scoped, tag = 'input window, operand 1, single buffered']
    #allocation6 [shape = 's32[1]{0}', space=sflag, size = 0x4, scoped, tag = 'scoped memory for tpu_custom_call.1']
    #allocation7 [shape = 'u8[1024]{0}', space=vmem, size = 0x400, scoped, tag = 'output window, operand 0, single buffered']
    %7 = vsyncpa [#allocation3], 0
    %8 = vsyncpa [#allocation6], 0
    %9 = vsyncpa [#allocation4], 0
    // Predicated region
    $region2: #{tpu_custom_call.1} parent=1 // pred_check
      _
    $region3: #{tpu_custom_call.1} parent=1 // pred_check_branch
      %11 = sbr.rel (0) target = $region5
    $region4: #{tpu_custom_call.1} parent=1 // pred_region
      %s13 = ssub.s32 16, 16
      %14 = vsyncadd [#allocation3], %s13
      %s16 = sshll.u32 [#allocation2], 4
      %s17 = int_to_ptr.vmem [resolvable:$true] %s16
      %19 = dma.hbm_to_vmem [thread:$0]  %s0, 16, %s17, [#allocation3]
    $region5: #{tpu_custom_call.1} parent=1 // pred_fallthru
      _
    // Predicated region
    $region6: #{tpu_custom_call.1} parent=1 // pred_check
      _
    $region7: #{tpu_custom_call.1} parent=1 // pred_check_branch
      %21 = sbr.rel (0) target = $region9
    $region8: #{tpu_custom_call.1} parent=1 // pred_region
      %s23 = ssub.s32 1024, 1024
      %24 = vsyncadd [#allocation6], %s23
      %s25 = sshll.u32 [#allocation5], 4
      %s26 = int_to_ptr.vmem [resolvable:$true] %s25
      %31 = dma.hbm_to_vmem [thread:$0]  %s1, 1024, %s26, [#allocation6], 128, 128, 8
    $region9: #{tpu_custom_call.1} parent=1 // pred_fallthru
      _
    // Predicated region
    $region10: #{tpu_custom_call.1} parent=1 // pred_check
      _
    $region11: #{tpu_custom_call.1} parent=1 // pred_check_branch
      %33 = sbr.rel (0) target = $region13
    $region12: #{tpu_custom_call.1} parent=1 // pred_region
      %34 = dma.done [#allocation3], 16
    $region13: #{tpu_custom_call.1} parent=1 // pred_fallthru
      _
    // Predicated region
    $region14: #{tpu_custom_call.1} parent=1 // pred_check
      _
    $region15: #{tpu_custom_call.1} parent=1 // pred_check_branch
      %36 = sbr.rel (0) target = $region17
    $region16: #{tpu_custom_call.1} parent=1 // pred_region
      %37 = dma.done [#allocation6], 1024
    $region17: #{tpu_custom_call.1} parent=1 // pred_fallthru
      _
    %v38 = vld [vmem:[#allocation2] sm:$0x1]
    %v39 = vld [vmem:[#allocation5] sm:$0xff]
    %v40 = vld [vmem:[#allocation5 + $0x8] sm:$0xff]
    %v41 = vld [vmem:[#allocation5 + $0x10] sm:$0xff]
    %v42 = vld [vmem:[#allocation5 + $0x18] sm:$0xff]
    %v43 = vld [vmem:[#allocation5 + $0x20] sm:$0xff]
    %v44 = vld [vmem:[#allocation5 + $0x28] sm:$0xff]
    %v45 = vld [vmem:[#allocation5 + $0x30] sm:$0xff]
    %v46 = vld [vmem:[#allocation5 + $0x38] sm:$0xff]
    %vm47 = vcmask 523264
    %v49 = vsel %vm47, %v38, 0
    %51 = vmatprep.subr.mxu0 0.0
    %52 = vmatpush1.msra.mxu0 %v39
    %53 = vmatprep.subr.mxu0 0.0
    %54 = vmatpush1.msra.mxu0 %v40
    %55 = vmatprep.subr.mxu0 0.0
    %56 = vmatpush1.msra.mxu0 %v41
    %57 = vmatprep.subr.mxu0 0.0
    %58 = vmatpush1.msra.mxu0 %v42
    %59 = vmatprep.subr.mxu0 0.0
    %60 = vmatpush1.msra.mxu0 %v43
    %61 = vmatprep.subr.mxu0 0.0
    %62 = vmatpush1.msra.mxu0 %v44
    %63 = vmatprep.subr.mxu0 0.0
    %64 = vmatpush1.msra.mxu0 %v45
    %65 = vmatprep.subr.mxu0 0.0
    %66 = vmatpush1.msra.mxu0 %v46
    %67 = vmatprep.subr.mxu0 0.0
    %68 = vmatpush1.msra.mxu0 0.0
    %69 = vmatprep.subr.mxu0 0.0
    %70 = vmatpush1.msra.mxu0 0.0
    %71 = vmatprep.subr.mxu0 0.0
    %72 = vmatpush1.msra.mxu0 0.0
    %73 = vmatprep.subr.mxu0 0.0
    %74 = vmatpush1.msra.mxu0 0.0
    %75 = vmatprep.subr.mxu0 0.0
    %76 = vmatpush1.msra.mxu0 0.0
    %77 = vmatprep.subr.mxu0 0.0
    %78 = vmatpush1.msra.mxu0 0.0
    %79 = vmatprep.subr.mxu0 0.0
    %80 = vmatpush1.msra.mxu0 0.0
    %81 = vmatprep.subr.mxu0 0.0
    %82 = vmatpush1.msra.mxu0 0.0
    %83 = vmatprep.subr.mxu0 0.0
    %84 = vmatpush1.msra.mxu0 0.0
    %85 = vmatprep.subr.mxu0 0.0
    %86 = vmatpush1.msra.mxu0 0.0
    %87 = vmatprep.subr.mxu0 0.0
    %88 = vmatpush1.msra.mxu0 0.0
    %89 = vmatprep.subr.mxu0 0.0
    %90 = vmatpush1.msra.mxu0 0.0
    %91 = vmatprep.subr.mxu0 0.0
    %92 = vmatpush1.msra.mxu0 0.0
    %93 = vmatprep.subr.mxu0 0.0
    %94 = vmatpush1.msra.mxu0 0.0
    %95 = vmatprep.subr.mxu0 0.0
    %96 = vmatpush1.msra.mxu0 0.0
    %97 = vmatprep.subr.mxu0 0.0
    %98 = vmatpush1.msra.mxu0 0.0
    %99 = vmatprep.subr.mxu0 0.0
    %100 = vmatpush1.msra.mxu0 0.0
    %101 = vmatprep.subr.mxu0 0.0
    %102 = vmatpush1.msra.mxu0 0.0
    %103 = vmatprep.subr.mxu0 0.0
    %104 = vmatpush1.msra.mxu0 0.0
    %105 = vmatprep.subr.mxu0 0.0
    %106 = vmatpush1.msra.mxu0 0.0
    %107 = vmatprep.subr.mxu0 0.0
    %108 = vmatpush1.msra.mxu0 0.0
    %109 = vmatprep.subr.mxu0 0.0
    %110 = vmatpush1.msra.mxu0 0.0
    %111 = vmatprep.subr.mxu0 0.0
    %112 = vmatpush1.msra.mxu0 0.0
    %113 = vmatprep.subr.mxu0 0.0
    %114 = vmatpush1.msra.mxu0 0.0
    %115 = vmatprep.mubr.f32.mxu0 0.0
    %116 = vmatmul.mubr.f32.gmra.mrb[0].mxu0 %v49
    %v117 = vpop.f32.mrb[0].mxu0
    %v118 = vadd.f32 0.0, %v117
    %v119 = vpop.f32.mrb[0].mxu0
    %120 = vdwg.mxu0
    %v121 = vlaneseq
    %v122 = vshrl.u32 %v121, 7
    %v123 = vsub.s32 0, %v122
    %v124 = vrot.slane %v118, %v123
    %125 = vst [vmem:[#allocation7] sm:$0x3] %v124
    // Predicated region
    $region18: #{tpu_custom_call.1} parent=1 // pred_check
      _
    $region19: #{tpu_custom_call.1} parent=1 // pred_check_branch
      %127 = sbr.rel (0) target = $region21
    $region20: #{tpu_custom_call.1} parent=1 // pred_region
      %s129 = ssub.s32 32, 32
      %130 = vsyncadd [#allocation4], %s129
      %s132 = sshll.u32 [#allocation7], 4
      %s133 = int_to_ptr.vmem [resolvable:$true] %s132
      %135 = dma.vmem_to_hbm [thread:$0]  %s133, 32, %s2, [#allocation4]
    $region21: #{tpu_custom_call.1} parent=1 // pred_fallthru
      _
    // Predicated region
    $region22: #{tpu_custom_call.1} parent=1 // pred_check
      _
    $region23: #{tpu_custom_call.1} parent=1 // pred_check_branch
      %137 = sbr.rel (0) target = $region25
    $region24: #{tpu_custom_call.1} parent=1 // pred_region
      %138 = dma.done [#allocation4], 32
    $region25: #{tpu_custom_call.1} parent=1 // pred_fallthru
      _
    %139 = vsyncpa [#allocation3], 1
    %140 = vsyncpa [#allocation6], 1
    %141 = vsyncpa [#allocation4], 1

</llo_original>
